<compile_context>
chip_gen: v5e
topology: v5e:2x2
jax: 0.10.0
libtpu: 0.0.40
codegen_flags: <defaults>
</compile_context>

<pallas_src>
import jax
import jax.numpy as jnp
from jax import lax
from jax.experimental import pallas as pl
from jax.experimental.pallas import tpu as pltpu

Q = 3          # Self-ONN order q
K = 3          # kernel_size
C_IN = 9       # conv1 in_channels
C1 = 32        # conv1 out_channels
C2 = 64        # conv2 out_channels
X2_F = 4       # fc1 in_features (68) - 64
X2_PAD = 8     # x2 / fc1wb sublane padding (4 -> 8)
POOL = 5       # MaxPool1d kernel_size (== stride)
EPS = 1e-5     # BatchNorm eps

IM1_W = K * Q * C_IN          # 81  conv1 im2col width
IM1_PAD = 128                 # lane-dense pad of the conv1 im2col slab
IM2_W = Q * C1                # 96  conv2 per-tap im2col width

# Row offsets inside the packed 32-lane weight slab (all multiples of 8).
_W1_OFF = 0                       # (128, 32) zero-padded conv1 weight
_FC1A_OFF = IM1_PAD               # (64, 32)  fc1.weight[:, :64].T
_FC1B_OFF = _FC1A_OFF + C2        # (8, 32)   fc1.weight[:, 64:].T (rows 4->8 padded)
_FC2_OFF = _FC1B_OFF + X2_PAD     # (32, 32)  fc2.weight.T (lanes 3->32 padded)
_WPACK_ROWS = _FC2_OFF + C1       # 232


def classifier_kernel(im1_ref, x2_ref, wpack_ref, w2_ref, vecs_ref, out_ref):
    n = x2_ref.shape[0]
    lout1 = im1_ref.shape[0] // n           # conv1 output length (valid conv)
    p1 = lout1 // POOL                      # MaxPool1d(5) output length
    lout2 = p1 - K + 1                      # conv2 output length

    # ---- unpack the consolidated parameter slabs (one DMA each) -------------
    vecs = vecs_ref[...]                                         # (8, 128)
    b1, g1, be1 = vecs[0:1, :C1], vecs[1:2, :C1], vecs[2:3, :C1]
    fc1b = vecs[3:4, :C1]
    b2, g2, be2 = vecs[4:5, :C2], vecs[5:6, :C2], vecs[6:7, :C2]
    fc2b = vecs[7:8, :C1]                                        # lanes 3: are 0

    w1 = wpack_ref[_W1_OFF:_W1_OFF + IM1_PAD, :]                 # (128, 32)
    fc1wa = wpack_ref[_FC1A_OFF:_FC1A_OFF + C2, :]               # (64, 32)
    fc1wb = wpack_ref[_FC1B_OFF:_FC1B_OFF + X2_PAD, :]           # (8, 32)
    fc2w = wpack_ref[_FC2_OFF:_FC2_OFF + C1, :]                  # (32, 32)

    # ---- SelfONN conv1: one whole-batch, lane-dense im2col matmul -----------
    c1 = jnp.dot(im1_ref[...], w1,
                 preferred_element_type=jnp.float32) + b1        # (N*Lout1, 32)

    # ---- BatchNorm1d(32), training stats over N*Lout1, + tanh ---------------
    cnt1 = float(n * lout1)
    m1 = jnp.sum(c1, axis=0, keepdims=True) / cnt1
    d1 = c1 - m1
    v1 = jnp.sum(d1 * d1, axis=0, keepdims=True) / cnt1          # biased variance
    t1 = jnp.tanh(d1 * (g1 * lax.rsqrt(v1 + EPS)) + be1)         # (N*Lout1, 32)

    # ---- MaxPool1d(5): batched elementwise maxima on live values ------------
    t1w = t1.reshape(n, lout1, C1)[:, :p1 * POOL, :].reshape(n * p1, POOL, C1)
    pm = t1w[:, 0, :]
    for j in range(1, POOL):
        pm = jnp.maximum(pm, t1w[:, j, :])                       # (N*P1, 32)

    # ---- SelfONN conv2: powers computed once, K accumulated batched dots ----
    pm3 = pm.reshape(n, p1, C1)
    pq = jnp.concatenate([pm3, pm3 * pm3, pm3 * pm3 * pm3], axis=-1)  # (N, P1, 96)
    z = jnp.zeros((n * lout2, C2), jnp.float32)
    for k in range(K):
        tap = pq[:, k:k + lout2, :].reshape(n * lout2, IM2_W)    # (N*Lout2, 96)
        z = z + jnp.dot(tap, w2_ref[k * IM2_W:(k + 1) * IM2_W, :],
                        preferred_element_type=jnp.float32)
    z = z + b2                                                   # (N*Lout2, 64)

    # ---- BatchNorm1d(64), training stats, + tanh ----------------------------
    cnt2 = float(n * lout2)
    m2 = jnp.sum(z, axis=0, keepdims=True) / cnt2
    d2 = z - m2
    v2 = jnp.sum(d2 * d2, axis=0, keepdims=True) / cnt2
    t2 = jnp.tanh(d2 * (g2 * lax.rsqrt(v2 + EPS)) + be2)         # (N*Lout2, 64)

    # ---- AdaptiveMaxPool1d(1): per-sample max over the length axis ----------
    t2w = t2.reshape(n, lout2, C2)
    feat = t2w[:, 0, :]
    for j in range(1, lout2):
        feat = jnp.maximum(feat, t2w[:, j, :])                   # (N, 64)

    # ---- head: relu(fc1(cat[feat, x2])) -> fc2, fully batched ---------------
    h = jnp.maximum(
        jnp.dot(feat, fc1wa, preferred_element_type=jnp.float32)
        + jnp.dot(x2_ref[...], fc1wb, preferred_element_type=jnp.float32)
        + fc1b, 0.0)
    o = jnp.dot(h, fc2w, preferred_element_type=jnp.float32) + fc2b   # (N, 32)
    out_ref[...] = o[:, 0:3].astype(out_ref.dtype)


@jax.jit
def selfonn_classifier(x1_ncl, x2, p):
    # PyTorch feeds x1 as NCL (N, C_in, L). Go channels-last and build the
    # conv1 powers + im2col slab here (lane order (k, q, c), padded 81 -> 128)
    # so the kernel's conv1 is a single unmasked whole-batch MXU contraction.
    x1 = jnp.transpose(x1_ncl, (0, 2, 1)).astype(jnp.float32)    # (N, L, C_IN)
    N, L, _ = x1.shape
    Lout1 = L - K + 1

    xq = jnp.concatenate([x1, x1 * x1, x1 * x1 * x1], axis=-1)   # (N, L, Q*C_IN)
    im1 = jnp.concatenate([xq[:, k:k + Lout1, :] for k in range(K)], axis=-1)
    im1 = im1.reshape(N * Lout1, IM1_W)
    im1 = jnp.pad(im1, ((0, 0), (0, IM1_PAD - IM1_W)))           # (N*Lout1, 128)

    # Pack every 32-lane weight into one slab (1 DMA): conv1 | fc1a | fc1b | fc2.
    w1p = jnp.pad(p['w1'].reshape(IM1_W, C1), ((0, IM1_PAD - IM1_W), (0, 0)))
    fc1wb_p = jnp.pad(p['fc1wb'], ((0, X2_PAD - X2_F), (0, 0)))
    fc2w_p = jnp.pad(p['fc2w'], ((0, 0), (0, C1 - 3)))
    wpack = jnp.concatenate([w1p, p['fc1wa'], fc1wb_p, fc2w_p], axis=0)  # (232, 32)

    w2f = p['w2'].reshape(K * Q * C1, C2)                        # (288, 64)

    # Pack all per-channel vectors into one (8, 128) slab (1 DMA).
    def _row(v):
        v2d = v.reshape(1, -1)
        return jnp.pad(v2d, ((0, 0), (0, 128 - v2d.shape[1])))
    vecs = jnp.concatenate(
        [_row(p['b1']), _row(p['g1']), _row(p['be1']), _row(p['fc1b']),
         _row(p['b2']), _row(p['g2']), _row(p['be2']), _row(p['fc2b'])],
        axis=0)                                                  # (8, 128)

    x2p = jnp.pad(x2.astype(jnp.float32), ((0, 0), (0, X2_PAD - X2_F)))  # (N, 8)

    vmem = pl.BlockSpec(memory_space=pltpu.MemorySpace.VMEM)
    return pl.pallas_call(
        classifier_kernel,
        out_shape=jax.ShapeDtypeStruct((N, 3), jnp.float32),
        in_specs=[vmem] * 5,
        out_specs=vmem,
        compiler_params=pltpu.CompilerParams(
            vmem_limit_bytes=32 * 1024 * 1024),
    )(im1, x2p, wpack, w2f, vecs)


def init_params(key):
    ks = jax.random.split(key, 9)
    f32 = jnp.float32
    return {
        # SelfONN conv weights stored as (K, Q, C_in, C_out)
        'w1': 0.3 * jax.random.normal(ks[0], (K, Q, C_IN, C1), f32),
        'b1': 0.1 * jax.random.normal(ks[1], (1, C1), f32),
        'g1': jnp.ones((1, C1), f32),
        'be1': jnp.zeros((1, C1), f32),
        'w2': 0.1 * jax.random.normal(ks[2], (K, Q, C1, C2), f32),
        'b2': 0.1 * jax.random.normal(ks[3], (1, C2), f32),
        'g2': jnp.ones((1, C2), f32),
        'be2': jnp.zeros((1, C2), f32),
        # fc1.weight (32, 68) split/transposed: [:, :64].T and [:, 64:].T
        'fc1wa': 0.1 * jax.random.normal(ks[4], (C2, 32), f32),
        'fc1wb': 0.1 * jax.random.normal(ks[5], (X2_F, 32), f32),
        'fc1b': 0.1 * jax.random.normal(ks[6], (1, 32), f32),
        'fc2w': 0.1 * jax.random.normal(ks[7], (32, 3), f32),
        'fc2b': 0.1 * jax.random.normal(ks[8], (1, 3), f32),
    }


def reference(x1_ncl, x2, p):
    """Pure-JAX reference of the same forward pass (for correctness check)."""
    x = jnp.transpose(x1_ncl, (0, 2, 1)).astype(jnp.float32)
    N, L, _ = x.shape
    Lout1 = L - K + 1
    y = jnp.zeros((N, Lout1, C1), jnp.float32)
    for k in range(K):
        xs = x[:, k:k + Lout1, :]
        for qi in range(Q):
            y = y + jnp.einsum('nlc,co->nlo', xs ** (qi + 1), p['w1'][k, qi])
    y = y + p['b1']
    m = y.mean(axis=(0, 1), keepdims=True)
    v = ((y - m) ** 2).mean(axis=(0, 1), keepdims=True)
    y = jnp.tanh((y - m) / jnp.sqrt(v + EPS) * p['g1'] + p['be1'])
    P1 = Lout1 // POOL
    y = y[:, :P1 * POOL, :].reshape(N, P1, POOL, C1).max(axis=2)
    Lout2 = P1 - K + 1
    z = jnp.zeros((N, Lout2, C2), jnp.float32)
    for k in range(K):
        xs = y[:, k:k + Lout2, :]
        for qi in range(Q):
            z = z + jnp.einsum('nlc,co->nlo', xs ** (qi + 1), p['w2'][k, qi])
    z = z + p['b2']
    m2 = z.mean(axis=(0, 1), keepdims=True)
    v2 = ((z - m2) ** 2).mean(axis=(0, 1), keepdims=True)
    z = jnp.tanh((z - m2) / jnp.sqrt(v2 + EPS) * p['g2'] + p['be2'])
    feat = z.max(axis=1)                                  # (N, C2) global max over length
    h = jnp.maximum(feat @ p['fc1wa'] + x2 @ p['fc1wb'] + p['fc1b'], 0.0)
    return h @ p['fc2w'] + p['fc2b']


if __name__ == "__main__":
    key = jax.random.PRNGKey(0)
    kx1, kx2, kp = jax.random.split(key, 3)
    N, L = 2, 32                                          # batch=2, sequence length=32
    x1 = jax.random.normal(kx1, (N, C_IN, L), jnp.float32)   # PyTorch NCL input
    x2 = jax.random.normal(kx2, (N, X2_F), jnp.float32)      # auxiliary features
    params = init_params(kp)

    out = selfonn_classifier(x1, x2, params)
    out = jax.block_until_ready(out)
    ref = reference(x1, x2, params)

    assert out.shape == (N, 3), out.shape
    if not jnp.allclose(out, ref, rtol=1e-3, atol=1e-3):
        raise AssertionError(f"kernel vs reference mismatch:\n{out}\n{ref}")
    print("KERNEL_OK")
</pallas_src>

<mosaic_0001>
module attributes {stable_mosaic.version = 11 : i64} {
  func.func @classifier_kernel(%arg0: memref<60x128xf32, #tpu.memory_space<vmem>>, %arg1: memref<2x8xf32, #tpu.memory_space<vmem>>, %arg2: memref<232x32xf32, #tpu.memory_space<vmem>>, %arg3: memref<288x64xf32, #tpu.memory_space<vmem>>, %arg4: memref<8x128xf32, #tpu.memory_space<vmem>>, %arg5: memref<2x3xf32, #tpu.memory_space<vmem>>) attributes {dimension_semantics = [], scalar_prefetch = 0 : i64, scratch_operands = 0 : i64, tpu.core_type = #tpu.core_type<tc>} {
    %c0 = arith.constant 0 : index
    %c0_0 = arith.constant 0 : index
    %0 = vector.load %arg4[%c0, %c0_0] : memref<8x128xf32, #tpu.memory_space<vmem>>, vector<8x128xf32>
    %1 = vector.extract_strided_slice %0 {offsets = [0, 0], sizes = [1, 32], strides = [1, 1]} : vector<8x128xf32> to vector<1x32xf32>
    %2 = vector.extract_strided_slice %0 {offsets = [1, 0], sizes = [1, 32], strides = [1, 1]} : vector<8x128xf32> to vector<1x32xf32>
    %3 = vector.extract_strided_slice %0 {offsets = [2, 0], sizes = [1, 32], strides = [1, 1]} : vector<8x128xf32> to vector<1x32xf32>
    %4 = vector.extract_strided_slice %0 {offsets = [3, 0], sizes = [1, 32], strides = [1, 1]} : vector<8x128xf32> to vector<1x32xf32>
    %5 = vector.extract_strided_slice %0 {offsets = [4, 0], sizes = [1, 64], strides = [1, 1]} : vector<8x128xf32> to vector<1x64xf32>
    %6 = vector.extract_strided_slice %0 {offsets = [5, 0], sizes = [1, 64], strides = [1, 1]} : vector<8x128xf32> to vector<1x64xf32>
    %7 = vector.extract_strided_slice %0 {offsets = [6, 0], sizes = [1, 64], strides = [1, 1]} : vector<8x128xf32> to vector<1x64xf32>
    %8 = vector.extract_strided_slice %0 {offsets = [7, 0], sizes = [1, 32], strides = [1, 1]} : vector<8x128xf32> to vector<1x32xf32>
    %c0_1 = arith.constant 0 : index
    %c0_2 = arith.constant 0 : index
    %9 = vector.load %arg2[%c0_1, %c0_2] : memref<232x32xf32, #tpu.memory_space<vmem>>, vector<128x32xf32>
    %c128 = arith.constant 128 : index
    %c0_3 = arith.constant 0 : index
    %10 = vector.load %arg2[%c128, %c0_3] : memref<232x32xf32, #tpu.memory_space<vmem>>, vector<64x32xf32>
    %c192 = arith.constant 192 : index
    %c0_4 = arith.constant 0 : index
    %11 = vector.load %arg2[%c192, %c0_4] : memref<232x32xf32, #tpu.memory_space<vmem>>, vector<8x32xf32>
    %c200 = arith.constant 200 : index
    %c0_5 = arith.constant 0 : index
    %12 = vector.load %arg2[%c200, %c0_5] : memref<232x32xf32, #tpu.memory_space<vmem>>, vector<32x32xf32>
    %c0_6 = arith.constant 0 : index
    %c0_7 = arith.constant 0 : index
    %13 = vector.load %arg0[%c0_6, %c0_7] : memref<60x128xf32, #tpu.memory_space<vmem>>, vector<60x128xf32>
    %cst = arith.constant dense<0.000000e+00> : vector<60x32xf32>
    %14 = tpu.matmul %13, %9, %cst {dimension_numbers = #tpu.dot_dimension_numbers<[1], [0], [0], [1], [0, 0, 1, 1], [], []>} : vector<60x128xf32>, vector<128x32xf32>, vector<60x32xf32> -> vector<60x32xf32>
    %15 = vector.broadcast %1 : vector<1x32xf32> to vector<60x32xf32>
    %16 = arith.addf %14, %15 : vector<60x32xf32>
    %cst_8 = arith.constant dense<0.000000e+00> : vector<32xf32>
    %17 = vector.multi_reduction <add>, %16, %cst_8 [0] : vector<60x32xf32> to vector<32xf32>
    %18 = vector.shape_cast %17 : vector<32xf32> to vector<1x32xf32>
    %cst_9 = arith.constant 6.000000e+01 : f32
    %19 = vector.broadcast %cst_9 : f32 to vector<1x32xf32>
    %20 = arith.divf %18, %19 : vector<1x32xf32>
    %21 = vector.broadcast %20 : vector<1x32xf32> to vector<60x32xf32>
    %22 = arith.subf %16, %21 : vector<60x32xf32>
    %23 = arith.mulf %22, %22 : vector<60x32xf32>
    %cst_10 = arith.constant dense<0.000000e+00> : vector<32xf32>
    %24 = vector.multi_reduction <add>, %23, %cst_10 [0] : vector<60x32xf32> to vector<32xf32>
    %25 = vector.shape_cast %24 : vector<32xf32> to vector<1x32xf32>
    %cst_11 = arith.constant 6.000000e+01 : f32
    %26 = vector.broadcast %cst_11 : f32 to vector<1x32xf32>
    %27 = arith.divf %25, %26 : vector<1x32xf32>
    %cst_12 = arith.constant 9.99999974E-6 : f32
    %28 = vector.broadcast %cst_12 : f32 to vector<1x32xf32>
    %29 = arith.addf %27, %28 : vector<1x32xf32>
    %30 = math.rsqrt %29 : vector<1x32xf32>
    %31 = arith.mulf %2, %30 : vector<1x32xf32>
    %32 = vector.broadcast %31 : vector<1x32xf32> to vector<60x32xf32>
    %33 = arith.mulf %22, %32 : vector<60x32xf32>
    %34 = vector.broadcast %3 : vector<1x32xf32> to vector<60x32xf32>
    %35 = arith.addf %33, %34 : vector<60x32xf32>
    %36 = math.tanh %35 : vector<60x32xf32>
    %37 = vector.shape_cast %36 : vector<60x32xf32> to vector<2x30x32xf32>
    %38 = vector.shape_cast %37 : vector<2x30x32xf32> to vector<12x5x32xf32>
    %39 = vector.extract_strided_slice %38 {offsets = [0, 0, 0], sizes = [12, 1, 32], strides = [1, 1, 1]} : vector<12x5x32xf32> to vector<12x1x32xf32>
    %40 = vector.shape_cast %39 : vector<12x1x32xf32> to vector<12x32xf32>
    %41 = vector.extract_strided_slice %38 {offsets = [0, 1, 0], sizes = [12, 1, 32], strides = [1, 1, 1]} : vector<12x5x32xf32> to vector<12x1x32xf32>
    %42 = vector.shape_cast %41 : vector<12x1x32xf32> to vector<12x32xf32>
    %43 = arith.maximumf %40, %42 : vector<12x32xf32>
    %44 = vector.extract_strided_slice %38 {offsets = [0, 2, 0], sizes = [12, 1, 32], strides = [1, 1, 1]} : vector<12x5x32xf32> to vector<12x1x32xf32>
    %45 = vector.shape_cast %44 : vector<12x1x32xf32> to vector<12x32xf32>
    %46 = arith.maximumf %43, %45 : vector<12x32xf32>
    %47 = vector.extract_strided_slice %38 {offsets = [0, 3, 0], sizes = [12, 1, 32], strides = [1, 1, 1]} : vector<12x5x32xf32> to vector<12x1x32xf32>
    %48 = vector.shape_cast %47 : vector<12x1x32xf32> to vector<12x32xf32>
    %49 = arith.maximumf %46, %48 : vector<12x32xf32>
    %50 = vector.extract_strided_slice %38 {offsets = [0, 4, 0], sizes = [12, 1, 32], strides = [1, 1, 1]} : vector<12x5x32xf32> to vector<12x1x32xf32>
    %51 = vector.shape_cast %50 : vector<12x1x32xf32> to vector<12x32xf32>
    %52 = arith.maximumf %49, %51 : vector<12x32xf32>
    %53 = vector.shape_cast %52 : vector<12x32xf32> to vector<2x6x32xf32>
    %54 = arith.mulf %53, %53 : vector<2x6x32xf32>
    %55 = arith.mulf %53, %53 : vector<2x6x32xf32>
    %56 = arith.mulf %55, %53 : vector<2x6x32xf32>
    %57 = tpu.concatenate %53, %54, %56 in 2 : vector<2x6x32xf32>, vector<2x6x32xf32>, vector<2x6x32xf32> -> vector<2x6x96xf32>
    %cst_13 = arith.constant 0.000000e+00 : f32
    %58 = vector.broadcast %cst_13 : f32 to vector<8x64xf32>
    %59 = vector.extract_strided_slice %57 {offsets = [0, 0, 0], sizes = [2, 4, 96], strides = [1, 1, 1]} : vector<2x6x96xf32> to vector<2x4x96xf32>
    %60 = vector.shape_cast %59 : vector<2x4x96xf32> to vector<8x96xf32>
    %c0_14 = arith.constant 0 : index
    %c0_15 = arith.constant 0 : index
    %61 = vector.load %arg3[%c0_14, %c0_15] : memref<288x64xf32, #tpu.memory_space<vmem>>, vector<96x64xf32>
    %cst_16 = arith.constant dense<0.000000e+00> : vector<8x64xf32>
    %62 = tpu.matmul %60, %61, %cst_16 {dimension_numbers = #tpu.dot_dimension_numbers<[1], [0], [0], [1], [0, 0, 1, 1], [], []>} : vector<8x96xf32>, vector<96x64xf32>, vector<8x64xf32> -> vector<8x64xf32>
    %63 = arith.addf %58, %62 : vector<8x64xf32>
    %64 = vector.extract_strided_slice %57 {offsets = [0, 1, 0], sizes = [2, 4, 96], strides = [1, 1, 1]} : vector<2x6x96xf32> to vector<2x4x96xf32>
    %65 = vector.shape_cast %64 : vector<2x4x96xf32> to vector<8x96xf32>
    %c96 = arith.constant 96 : index
    %c0_17 = arith.constant 0 : index
    %66 = vector.load %arg3[%c96, %c0_17] : memref<288x64xf32, #tpu.memory_space<vmem>>, vector<96x64xf32>
    %cst_18 = arith.constant dense<0.000000e+00> : vector<8x64xf32>
    %67 = tpu.matmul %65, %66, %cst_18 {dimension_numbers = #tpu.dot_dimension_numbers<[1], [0], [0], [1], [0, 0, 1, 1], [], []>} : vector<8x96xf32>, vector<96x64xf32>, vector<8x64xf32> -> vector<8x64xf32>
    %68 = arith.addf %63, %67 : vector<8x64xf32>
    %69 = vector.extract_strided_slice %57 {offsets = [0, 2, 0], sizes = [2, 4, 96], strides = [1, 1, 1]} : vector<2x6x96xf32> to vector<2x4x96xf32>
    %70 = vector.shape_cast %69 : vector<2x4x96xf32> to vector<8x96xf32>
    %c192_19 = arith.constant 192 : index
    %c0_20 = arith.constant 0 : index
    %71 = vector.load %arg3[%c192_19, %c0_20] : memref<288x64xf32, #tpu.memory_space<vmem>>, vector<96x64xf32>
    %cst_21 = arith.constant dense<0.000000e+00> : vector<8x64xf32>
    %72 = tpu.matmul %70, %71, %cst_21 {dimension_numbers = #tpu.dot_dimension_numbers<[1], [0], [0], [1], [0, 0, 1, 1], [], []>} : vector<8x96xf32>, vector<96x64xf32>, vector<8x64xf32> -> vector<8x64xf32>
    %73 = arith.addf %68, %72 : vector<8x64xf32>
    %74 = vector.broadcast %5 : vector<1x64xf32> to vector<8x64xf32>
    %75 = arith.addf %73, %74 : vector<8x64xf32>
    %cst_22 = arith.constant dense<0.000000e+00> : vector<64xf32>
    %76 = vector.multi_reduction <add>, %75, %cst_22 [0] : vector<8x64xf32> to vector<64xf32>
    %77 = vector.shape_cast %76 : vector<64xf32> to vector<1x64xf32>
    %cst_23 = arith.constant 8.000000e+00 : f32
    %78 = vector.broadcast %cst_23 : f32 to vector<1x64xf32>
    %79 = arith.divf %77, %78 : vector<1x64xf32>
    %80 = vector.broadcast %79 : vector<1x64xf32> to vector<8x64xf32>
    %81 = arith.subf %75, %80 : vector<8x64xf32>
    %82 = arith.mulf %81, %81 : vector<8x64xf32>
    %cst_24 = arith.constant dense<0.000000e+00> : vector<64xf32>
    %83 = vector.multi_reduction <add>, %82, %cst_24 [0] : vector<8x64xf32> to vector<64xf32>
    %84 = vector.shape_cast %83 : vector<64xf32> to vector<1x64xf32>
    %cst_25 = arith.constant 8.000000e+00 : f32
    %85 = vector.broadcast %cst_25 : f32 to vector<1x64xf32>
    %86 = arith.divf %84, %85 : vector<1x64xf32>
    %cst_26 = arith.constant 9.99999974E-6 : f32
    %87 = vector.broadcast %cst_26 : f32 to vector<1x64xf32>
    %88 = arith.addf %86, %87 : vector<1x64xf32>
    %89 = math.rsqrt %88 : vector<1x64xf32>
    %90 = arith.mulf %6, %89 : vector<1x64xf32>
    %91 = vector.broadcast %90 : vector<1x64xf32> to vector<8x64xf32>
    %92 = arith.mulf %81, %91 : vector<8x64xf32>
    %93 = vector.broadcast %7 : vector<1x64xf32> to vector<8x64xf32>
    %94 = arith.addf %92, %93 : vector<8x64xf32>
    %95 = math.tanh %94 : vector<8x64xf32>
    %96 = vector.shape_cast %95 : vector<8x64xf32> to vector<2x4x64xf32>
    %97 = vector.extract_strided_slice %96 {offsets = [0, 0, 0], sizes = [2, 1, 64], strides = [1, 1, 1]} : vector<2x4x64xf32> to vector<2x1x64xf32>
    %98 = vector.shape_cast %97 : vector<2x1x64xf32> to vector<2x64xf32>
    %99 = vector.extract_strided_slice %96 {offsets = [0, 1, 0], sizes = [2, 1, 64], strides = [1, 1, 1]} : vector<2x4x64xf32> to vector<2x1x64xf32>
    %100 = vector.shape_cast %99 : vector<2x1x64xf32> to vector<2x64xf32>
    %101 = arith.maximumf %98, %100 : vector<2x64xf32>
    %102 = vector.extract_strided_slice %96 {offsets = [0, 2, 0], sizes = [2, 1, 64], strides = [1, 1, 1]} : vector<2x4x64xf32> to vector<2x1x64xf32>
    %103 = vector.shape_cast %102 : vector<2x1x64xf32> to vector<2x64xf32>
    %104 = arith.maximumf %101, %103 : vector<2x64xf32>
    %105 = vector.extract_strided_slice %96 {offsets = [0, 3, 0], sizes = [2, 1, 64], strides = [1, 1, 1]} : vector<2x4x64xf32> to vector<2x1x64xf32>
    %106 = vector.shape_cast %105 : vector<2x1x64xf32> to vector<2x64xf32>
    %107 = arith.maximumf %104, %106 : vector<2x64xf32>
    %cst_27 = arith.constant dense<0.000000e+00> : vector<2x32xf32>
    %108 = tpu.matmul %107, %10, %cst_27 {dimension_numbers = #tpu.dot_dimension_numbers<[1], [0], [0], [1], [0, 0, 1, 1], [], []>} : vector<2x64xf32>, vector<64x32xf32>, vector<2x32xf32> -> vector<2x32xf32>
    %c0_28 = arith.constant 0 : index
    %c0_29 = arith.constant 0 : index
    %109 = vector.load %arg1[%c0_28, %c0_29] : memref<2x8xf32, #tpu.memory_space<vmem>>, vector<2x8xf32>
    %cst_30 = arith.constant dense<0.000000e+00> : vector<2x32xf32>
    %110 = tpu.matmul %109, %11, %cst_30 {dimension_numbers = #tpu.dot_dimension_numbers<[1], [0], [0], [1], [0, 0, 1, 1], [], []>} : vector<2x8xf32>, vector<8x32xf32>, vector<2x32xf32> -> vector<2x32xf32>
    %111 = arith.addf %108, %110 : vector<2x32xf32>
    %112 = vector.broadcast %4 : vector<1x32xf32> to vector<2x32xf32>
    %113 = arith.addf %111, %112 : vector<2x32xf32>
    %cst_31 = arith.constant 0.000000e+00 : f32
    %114 = vector.broadcast %cst_31 : f32 to vector<2x32xf32>
    %115 = arith.maximumf %113, %114 : vector<2x32xf32>
    %cst_32 = arith.constant dense<0.000000e+00> : vector<2x32xf32>
    %116 = tpu.matmul %115, %12, %cst_32 {dimension_numbers = #tpu.dot_dimension_numbers<[1], [0], [0], [1], [0, 0, 1, 1], [], []>} : vector<2x32xf32>, vector<32x32xf32>, vector<2x32xf32> -> vector<2x32xf32>
    %117 = vector.broadcast %8 : vector<1x32xf32> to vector<2x32xf32>
    %118 = arith.addf %116, %117 : vector<2x32xf32>
    %119 = vector.extract_strided_slice %118 {offsets = [0, 0], sizes = [2, 3], strides = [1, 1]} : vector<2x32xf32> to vector<2x3xf32>
    %c0_33 = arith.constant 0 : index
    %c0_34 = arith.constant 0 : index
    %120 = vector.load %arg5[%c0_33, %c0_34] : memref<2x3xf32, #tpu.memory_space<vmem>>, vector<2x3xf32>
    tpu.vector_store %arg5[%c0_33, %c0_34], %119 {strides = array<i32>} : memref<2x3xf32, #tpu.memory_space<vmem>>, vector<2x3xf32>,
    return
  }
}

</mosaic_0001>

<llo_original>
// kernel: selfonn_classifier.1
$region0: #{selfonn_classifier.1}
  #allocation0 [shape = 'u32[]', space=smem, size = 0x4, offset = 0x4, fixed_abs, tag = 'smem constant byte address 0x4 - core index']
  #allocation1 [shape = 'u32[72,128]{1,0:T(1,128)}', space=vmem, size = 0x9000, scoped, tag = 'internal scratch']
  %s0 = inlined_call_operand.vmem [shape: f32[60,128], index: 0, kind: input, shape index: {}]
  %s1 = inlined_call_operand.vmem [shape: f32[2,8], index: 1, kind: input, shape index: {}]
  %s2 = inlined_call_operand.vmem [shape: f32[232,32], index: 2, kind: input, shape index: {}]
  %s3 = inlined_call_operand.vmem [shape: f32[288,64], index: 3, kind: input, shape index: {}]
  %s4 = inlined_call_operand.vmem [shape: f32[8,128], index: 4, kind: input, shape index: {}]
  %s5 = inlined_call_operand.hbm [shape: f32[2,3], index: 5, kind: output, shape index: {}]
  %s6 = sld [smem:[#allocation0]]
  $region30: #{selfonn_classifier.1} parent=0
    _
  %s8 = ssub.s32 1, %s6
  %s9 = scalar_select 0, %s8, %s6
  $region1: #{selfonn_classifier.1} parent=0
    #allocation2 [shape = 'u8[1024]{0}', space=vmem, size = 0x400, scoped, tag = 'output window, operand 0, single buffered']
    #allocation3 [shape = 's32[1]{0}', space=sflag, size = 0x4, scoped, tag = 'scoped memory for selfonn_classifier.1']
    %10 = vsyncpa [#allocation3], 0
    // Predicated region
    $region2: #{selfonn_classifier.1} parent=1 // pred_check
      _
    $region3: #{selfonn_classifier.1} parent=1 // pred_check_branch
      %12 = sbr.rel (0) target = $region5
    $region4: #{selfonn_classifier.1} parent=1 // pred_region
      _
    $region5: #{selfonn_classifier.1} parent=1 // pred_fallthru
      _
    // Predicated region
    $region6: #{selfonn_classifier.1} parent=1 // pred_check
      _
    $region7: #{selfonn_classifier.1} parent=1 // pred_check_branch
      %14 = sbr.rel (0) target = $region9
    $region8: #{selfonn_classifier.1} parent=1 // pred_region
      _
    $region9: #{selfonn_classifier.1} parent=1 // pred_fallthru
      _
    // Predicated region
    $region10: #{selfonn_classifier.1} parent=1 // pred_check
      _
    $region11: #{selfonn_classifier.1} parent=1 // pred_check_branch
      %16 = sbr.rel (0) target = $region13
    $region12: #{selfonn_classifier.1} parent=1 // pred_region
      _
    $region13: #{selfonn_classifier.1} parent=1 // pred_fallthru
      _
    // Predicated region
    $region14: #{selfonn_classifier.1} parent=1 // pred_check
      _
    $region15: #{selfonn_classifier.1} parent=1 // pred_check_branch
      %18 = sbr.rel (0) target = $region17
    $region16: #{selfonn_classifier.1} parent=1 // pred_region
      _
    $region17: #{selfonn_classifier.1} parent=1 // pred_fallthru
      _
    // Predicated region
    $region18: #{selfonn_classifier.1} parent=1 // pred_check
      _
    $region19: #{selfonn_classifier.1} parent=1 // pred_check_branch
      %20 = sbr.rel (0) target = $region21
    $region20: #{selfonn_classifier.1} parent=1 // pred_region
      _
    $region21: #{selfonn_classifier.1} parent=1 // pred_fallthru
      _
    %v21 = vld [vmem:[%s4] sm:$0xff]
    %v22 = vld [vmem:[%s2] sm:$0xff]
    %v23 = vld [vmem:[%s2 + $0x8] sm:$0xff]
    %v24 = vld [vmem:[%s2 + $0x10] sm:$0xff]
    %v25 = vld [vmem:[%s2 + $0x18] sm:$0xff]
    %v26 = vld [vmem:[%s2 + $0x20] sm:$0xff]
    %v27 = vld [vmem:[%s2 + $0x28] sm:$0xff]
    %v28 = vld [vmem:[%s2 + $0x30] sm:$0xff]
    %v29 = vld [vmem:[%s2 + $0x38] sm:$0xff]
    %v30 = vld [vmem:[%s2 + $0x40] sm:$0xff]
    %v31 = vld [vmem:[%s2 + $0x48] sm:$0xff]
    %v32 = vld [vmem:[%s2 + $0x50] sm:$0xff]
    %v33 = vld [vmem:[%s2 + $0x58] sm:$0xff]
    %v34 = vld [vmem:[%s2 + $0x60] sm:$0xff]
    %v35 = vld [vmem:[%s2 + $0x68] sm:$0xff]
    %v36 = vld [vmem:[%s2 + $0x70] sm:$0xff]
    %v37 = vld [vmem:[%s2 + $0x78] sm:$0xff]
    %v38 = vld [vmem:[%s2 + $0x80] sm:$0xff]
    %v39 = vld [vmem:[%s2 + $0x88] sm:$0xff]
    %v40 = vld [vmem:[%s2 + $0x90] sm:$0xff]
    %v41 = vld [vmem:[%s2 + $0x98] sm:$0xff]
    %v42 = vld [vmem:[%s2 + $0xa0] sm:$0xff]
    %v43 = vld [vmem:[%s2 + $0xa8] sm:$0xff]
    %v44 = vld [vmem:[%s2 + $0xb0] sm:$0xff]
    %v45 = vld [vmem:[%s2 + $0xb8] sm:$0xff]
    %v46 = vld [vmem:[%s2 + $0xc0] sm:$0xff]
    %v47 = vld [vmem:[%s2 + $0xc8] sm:$0xff]
    %v48 = vld [vmem:[%s2 + $0xd0] sm:$0xff]
    %v49 = vld [vmem:[%s2 + $0xd8] sm:$0xff]
    %v50 = vld [vmem:[%s2 + $0xe0] sm:$0xff]
    %v51 = vld [vmem:[%s0] sm:$0xff]
    %v52 = vld [vmem:[%s0 + $0x8] sm:$0xff]
    %v53 = vld [vmem:[%s0 + $0x10] sm:$0xff]
    %v54 = vld [vmem:[%s0 + $0x18] sm:$0xff]
    %v55 = vld [vmem:[%s0 + $0x20] sm:$0xff]
    %v56 = vld [vmem:[%s0 + $0x28] sm:$0xff]
    %v57 = vld [vmem:[%s0 + $0x30] sm:$0xff]
    %v58 = vld [vmem:[%s0 + $0x38] sm:$0xf]
    %v59 = vperm.slane %v21, 0
    %60 = vmatpush.msra.mxu0 %v37
    %61 = vmatpush.msra.mxu0 %v36
    %62 = vmatpush.msra.mxu0 %v35
    %63 = vmatpush.msra.mxu0 %v34
    %64 = vmatpush.msra.mxu0 %v33
    %65 = vmatpush.msra.mxu0 %v32
    %66 = vmatpush.msra.mxu0 %v31
    %67 = vmatpush.msra.mxu0 %v30
    %68 = vmatpush.msra.mxu0 %v29
    %69 = vmatpush.msra.mxu0 %v28
    %70 = vmatpush.msra.mxu0 %v27
    %71 = vmatpush.msra.mxu0 %v26
    %72 = vmatpush.msra.mxu0 %v25
    %73 = vmatpush.msra.mxu0 %v24
    %74 = vmatpush.msra.mxu0 %v23
    %75 = vmatpush.msra.mxu0 %v22
    %76 = vmatmul.f32.gmra.mxu0 %v51
    %v77 = vpop.f32.mrf.mxu0
    %v78 = vadd.f32 %v59, %v77
    %79 = vmatmul.f32.gmra.mxu0 %v52
    %v80 = vpop.f32.mrf.mxu0
    %v81 = vadd.f32 %v59, %v80
    %82 = vmatmul.f32.gmra.mxu0 %v53
    %v83 = vpop.f32.mrf.mxu0
    %v84 = vadd.f32 %v59, %v83
    %85 = vmatmul.f32.gmra.mxu0 %v54
    %v86 = vpop.f32.mrf.mxu0
    %v87 = vadd.f32 %v59, %v86
    %88 = vmatmul.f32.gmra.mxu0 %v55
    %v89 = vpop.f32.mrf.mxu0
    %v90 = vadd.f32 %v59, %v89
    %91 = vmatmul.f32.gmra.mxu0 %v56
    %v92 = vpop.f32.mrf.mxu0
    %v93 = vadd.f32 %v59, %v92
    %94 = vmatmul.f32.gmra.mxu0 %v57
    %v95 = vpop.f32.mrf.mxu0
    %v96 = vadd.f32 %v59, %v95
    %97 = vmatmul.f32.gmra.mxu0 %v58
    %v98 = vpop.f32.mrf.mxu0
    %v99 = vadd.f32 %v59, %v98
    %100 = vdwg.mxu0
    %vm101 = vcmask 261120
    %v102 = vsel %vm101, %v78, 0.0
    %v103 = vsel %vm101, %v81, 0.0
    %v104 = vadd.f32 %v102, %v103
    %v105 = vsel %vm101, %v84, 0.0
    %v106 = vadd.f32 %v104, %v105
    %v107 = vsel %vm101, %v87, 0.0
    %v108 = vadd.f32 %v106, %v107
    %v109 = vsel %vm101, %v90, 0.0
    %v110 = vadd.f32 %v108, %v109
    %v111 = vsel %vm101, %v93, 0.0
    %v112 = vadd.f32 %v110, %v111
    %v113 = vsel %vm101, %v96, 0.0
    %v114 = vadd.f32 %v112, %v113
    %vm115 = vcmask 257024
    %v116 = vsel %vm115, %v99, 0.0
    %v117 = vadd.f32 %v114, %v116
    %v118 = vrot.slane %v117, 4
    %v119 = vadd.f32 %v117, %v118
    %v120 = vrot.slane %v119, 2
    %v121 = vadd.f32 %v119, %v120
    %v122 = vrot.slane %v121, 1
    %v123 = vadd.f32 %v121, %v122
    %v124 = vrcp.pop 60.0
    %v125 = vmul.f32 60.0, %v124
    %v126 = vsub.f32 1.0, %v125
    %v127 = vmul.f32 %v124, %v126
    %v128 = vadd.f32 %v124, %v127
    %vm129 = vweird.f32 %v124
    %v130 = vsel %vm129, %v124, %v128
    %v131 = vmul.f32 %v123, %v130
    %v132 = vsub.f32 %v78, %v131
    %v133 = vsub.f32 %v81, %v131
    %v134 = vsub.f32 %v84, %v131
    %v135 = vsub.f32 %v87, %v131
    %v136 = vsub.f32 %v90, %v131
    %v137 = vsub.f32 %v93, %v131
    %v138 = vsub.f32 %v96, %v131
    %v139 = vsub.f32 %v99, %v131
    %v140 = vmul.f32 %v132, %v132
    %v141 = vmul.f32 %v133, %v133
    %v142 = vmul.f32 %v134, %v134
    %v143 = vmul.f32 %v135, %v135
    %v144 = vmul.f32 %v136, %v136
    %v145 = vmul.f32 %v137, %v137
    %v146 = vmul.f32 %v138, %v138
    %v147 = vmul.f32 %v139, %v139
    %v148 = vsel %vm101, %v140, 0.0
    %v149 = vsel %vm101, %v141, 0.0
    %v150 = vadd.f32 %v148, %v149
    %v151 = vsel %vm101, %v142, 0.0
    %v152 = vadd.f32 %v150, %v151
    %v153 = vsel %vm101, %v143, 0.0
    %v154 = vadd.f32 %v152, %v153
    %v155 = vsel %vm101, %v144, 0.0
    %v156 = vadd.f32 %v154, %v155
    %v157 = vsel %vm101, %v145, 0.0
    %v158 = vadd.f32 %v156, %v157
    %v159 = vsel %vm101, %v146, 0.0
    %v160 = vadd.f32 %v158, %v159
    %v161 = vsel %vm115, %v147, 0.0
    %v162 = vadd.f32 %v160, %v161
    %v163 = vrot.slane %v162, 4
    %v164 = vadd.f32 %v162, %v163
    %v165 = vrot.slane %v164, 2
    %v166 = vadd.f32 %v164, %v165
    %v167 = vrot.slane %v166, 1
    %v168 = vadd.f32 %v166, %v167
    %v169 = vmul.f32 %v168, %v130
    %v170 = vadd.f32 %v169, 1e-05
    %v171 = vrsqrt.pop %v170
    %v172 = vmul.f32 %v171, %v170
    %v173 = vmul.f32 %v172, %v171
    %v174 = vmul.f32 0.5, %v173
    %v175 = vsub.f32 1.5, %v174
    %v176 = vmul.f32 %v171, %v175
    %vm177 = vweird.f32 %v170
    %vm178 = vweird.f32 %v171
    %vm179 = vmor %vm177, %vm178
    %v180 = vsel %vm179, %v171, %v176
    %v181 = vmul.f32 %v21, %v180
    %v182 = vperm.slane %v181, 1
    %v183 = vmul.f32 %v132, %v182
    %v184 = vmul.f32 %v133, %v182
    %v185 = vmul.f32 %v134, %v182
    %v186 = vmul.f32 %v135, %v182
    %v187 = vmul.f32 %v136, %v182
    %v188 = vmul.f32 %v137, %v182
    %v189 = vmul.f32 %v138, %v182
    %v190 = vmul.f32 %v139, %v182
    %v191 = vperm.slane %v21, 2
    %v192 = vadd.f32 %v183, %v191
    %v193 = vadd.f32 %v184, %v191
    %v194 = vadd.f32 %v185, %v191
    %v195 = vadd.f32 %v186, %v191
    %v196 = vadd.f32 %v187, %v191
    %v197 = vadd.f32 %v188, %v191
    %v198 = vadd.f32 %v189, %v191
    %v199 = vadd.f32 %v190, %v191
    %v200 = vtanh.pop %v192
    %v201 = vtanh.pop %v193
    %v202 = vtanh.pop %v194
    %v203 = vtanh.pop %v195
    %v204 = vtanh.pop %v196
    %v205 = vtanh.pop %v197
    %v206 = vtanh.pop %v198
    %v207 = vtanh.pop %v199
    %v216 = vrot.slane %v200, 1
    %v217 = vrot.slane %v200, 2
    %v218 = vrot.slane %v200, 3
    %v219 = vrot.slane %v200, 4
    %v220 = vrot.slane %v200, 5
    %v221 = vrot.slane %v200, 6
    %v222 = vrot.slane %v200, 7
    %v223 = vrot.slane %v201, 1
    %v224 = vrot.slane %v201, 2
    %v225 = vrot.slane %v201, 3
    %v226 = vrot.slane %v201, 4
    %v227 = vrot.slane %v201, 5
    %v228 = vrot.slane %v201, 6
    %v229 = vrot.slane %v201, 7
    %v230 = vrot.slane %v202, 1
    %v231 = vrot.slane %v202, 2
    %v232 = vrot.slane %v202, 3
    %v233 = vrot.slane %v202, 4
    %v234 = vrot.slane %v202, 5
    %v235 = vrot.slane %v202, 6
    %v236 = vrot.slane %v202, 7
    %v237 = vrot.slane %v203, 1
    %v238 = vrot.slane %v203, 2
    %v239 = vrot.slane %v203, 3
    %v240 = vrot.slane %v203, 4
    %v241 = vrot.slane %v203, 5
    %v242 = vrot.slane %v203, 6
    %v243 = vrot.slane %v203, 7
    %v244 = vrot.slane %v204, 1
    %v245 = vrot.slane %v204, 2
    %v246 = vrot.slane %v204, 3
    %v247 = vrot.slane %v204, 4
    %v248 = vrot.slane %v204, 5
    %v249 = vrot.slane %v204, 6
    %v250 = vrot.slane %v204, 7
    %v251 = vrot.slane %v205, 1
    %v252 = vrot.slane %v205, 2
    %v253 = vrot.slane %v205, 3
    %v254 = vrot.slane %v205, 4
    %v255 = vrot.slane %v205, 5
    %v256 = vrot.slane %v205, 6
    %v257 = vrot.slane %v205, 7
    %v258 = vrot.slane %v206, 1
    %v259 = vrot.slane %v206, 2
    %v260 = vrot.slane %v206, 3
    %v261 = vrot.slane %v206, 4
    %v262 = vrot.slane %v206, 5
    %v263 = vrot.slane %v206, 6
    %v264 = vrot.slane %v206, 7
    %v265 = vrot.slane %v207, 1
    %v266 = vrot.slane %v207, 2
    %v267 = vrot.slane %v207, 3
    %v320 = vmax.f32 %v200, %v216
    %v321 = vmax.f32 %v220, %v221
    %v322 = vmax.f32 %v224, %v225
    %v323 = vmax.f32 %v229, %v202
    %v324 = vmax.f32 %v233, %v234
    %v325 = vmax.f32 %v237, %v238
    %v326 = vmax.f32 %v242, %v243
    %v327 = vmax.f32 %v246, %v247
    %v328 = vmax.f32 %v205, %v251
    %v329 = vmax.f32 %v255, %v256
    %v330 = vmax.f32 %v259, %v260
    %v331 = vmax.f32 %v264, %v207
    %v332 = vmax.f32 %v320, %v217
    %v333 = vmax.f32 %v321, %v222
    %v334 = vmax.f32 %v322, %v226
    %v335 = vmax.f32 %v323, %v230
    %v336 = vmax.f32 %v324, %v235
    %v337 = vmax.f32 %v325, %v239
    %v338 = vmax.f32 %v326, %v204
    %v339 = vmax.f32 %v327, %v248
    %v340 = vmax.f32 %v328, %v252
    %v341 = vmax.f32 %v329, %v257
    %v342 = vmax.f32 %v330, %v261
    %v343 = vmax.f32 %v331, %v265
    %v344 = vmax.f32 %v332, %v218
    %v345 = vmax.f32 %v333, %v201
    %v346 = vmax.f32 %v334, %v227
    %v347 = vmax.f32 %v335, %v231
    %v348 = vmax.f32 %v336, %v236
    %v349 = vmax.f32 %v337, %v240
    %v350 = vmax.f32 %v338, %v244
    %v351 = vmax.f32 %v339, %v249
    %v352 = vmax.f32 %v340, %v253
    %v353 = vmax.f32 %v341, %v206
    %v354 = vmax.f32 %v342, %v262
    %v355 = vmax.f32 %v343, %v266
    %v356 = vmax.f32 %v344, %v219
    %v357 = vmax.f32 %v345, %v223
    %v358 = vmax.f32 %v346, %v228
    %v359 = vmax.f32 %v347, %v232
    %v360 = vmax.f32 %v348, %v203
    %v361 = vmax.f32 %v349, %v241
    %v362 = vmax.f32 %v350, %v245
    %v363 = vmax.f32 %v351, %v250
    %v364 = vmax.f32 %v352, %v254
    %v365 = vmax.f32 %v353, %v258
    %v366 = vmax.f32 %v354, %v263
    %v367 = vmax.f32 %v355, %v267
    %v368 = vmul.f32 %v356, %v356
    %v369 = vmul.f32 %v357, %v357
    %v370 = vmul.f32 %v358, %v358
    %v371 = vmul.f32 %v359, %v359
    %v372 = vmul.f32 %v360, %v360
    %v373 = vmul.f32 %v361, %v361
    %v374 = vmul.f32 %v362, %v362
    %v375 = vmul.f32 %v363, %v363
    %v376 = vmul.f32 %v364, %v364
    %v377 = vmul.f32 %v365, %v365
    %v378 = vmul.f32 %v366, %v366
    %v379 = vmul.f32 %v367, %v367
    %v380 = vmul.f32 %v368, %v356
    %v381 = vmul.f32 %v369, %v357
    %v382 = vmul.f32 %v370, %v358
    %v383 = vmul.f32 %v371, %v359
    %v384 = vmul.f32 %v372, %v360
    %v385 = vmul.f32 %v373, %v361
    %v386 = vmul.f32 %v374, %v362
    %v387 = vmul.f32 %v375, %v363
    %v388 = vmul.f32 %v376, %v364
    %v389 = vmul.f32 %v377, %v365
    %v390 = vmul.f32 %v378, %v366
    %v391 = vmul.f32 %v379, %v367
    %404 = vst [vmem:[#allocation1] ss:$9 sm:$0xff] %v356
    %s405 = scalar_lea.vmem [#allocation1], 1
    %406 = vst [vmem:[%s405] ss:$9 sm:$0xff] %v357
    %s407 = scalar_lea.vmem [#allocation1], 2
    %408 = vst [vmem:[%s407] ss:$9 sm:$0xff] %v358
    %s409 = scalar_lea.vmem [#allocation1], 3
    %410 = vst [vmem:[%s409] ss:$9 sm:$0xff] %v359
    %s411 = scalar_lea.vmem [#allocation1], 4
    %412 = vst [vmem:[%s411] ss:$9 sm:$0xff] %v360
    %s413 = scalar_lea.vmem [#allocation1], 5
    %414 = vst [vmem:[%s413] ss:$9 sm:$0xff] %v361
    %v415 = vld [vmem:[#allocation1] sm:$0xff]
    %416 = vst [vmem:[#allocation1] ss:$9 sm:$0xff] %v362
    %417 = vst [vmem:[%s405] ss:$9 sm:$0xff] %v363
    %418 = vst [vmem:[%s407] ss:$9 sm:$0xff] %v364
    %419 = vst [vmem:[%s409] ss:$9 sm:$0xff] %v365
    %420 = vst [vmem:[%s411] ss:$9 sm:$0xff] %v366
    %421 = vst [vmem:[%s413] ss:$9 sm:$0xff] %v367
    %v422 = vld [vmem:[#allocation1] sm:$0xff]
    %437 = vst [vmem:[#allocation1] ss:$9 sm:$0xff] %v368
    %s438 = scalar_lea.vmem [#allocation1], 1
    %439 = vst [vmem:[%s438] ss:$9 sm:$0xff] %v369
    %s440 = scalar_lea.vmem [#allocation1], 2
    %441 = vst [vmem:[%s440] ss:$9 sm:$0xff] %v370
    %s442 = scalar_lea.vmem [#allocation1], 3
    %443 = vst [vmem:[%s442] ss:$9 sm:$0xff] %v371
    %s444 = scalar_lea.vmem [#allocation1], 4
    %445 = vst [vmem:[%s444] ss:$9 sm:$0xff] %v372
    %s446 = scalar_lea.vmem [#allocation1], 5
    %447 = vst [vmem:[%s446] ss:$9 sm:$0xff] %v373
    %v448 = vld [vmem:[#allocation1] sm:$0xff]
    %449 = vst [vmem:[#allocation1] ss:$9 sm:$0xff] %v374
    %450 = vst [vmem:[%s438] ss:$9 sm:$0xff] %v375
    %451 = vst [vmem:[%s440] ss:$9 sm:$0xff] %v376
    %452 = vst [vmem:[%s442] ss:$9 sm:$0xff] %v377
    %453 = vst [vmem:[%s444] ss:$9 sm:$0xff] %v378
    %454 = vst [vmem:[%s446] ss:$9 sm:$0xff] %v379
    %v455 = vld [vmem:[#allocation1] sm:$0xff]
    %456 = vrot.lane.b32.xlu0 %v448, 32
    %v457 = vpop.permute.xlu0 %456
    %458 = vrot.lane.b32.xlu0 %v455, 32
    %v459 = vpop.permute.xlu0 %458
    %474 = vst [vmem:[#allocation1] ss:$9 sm:$0xff] %v380
    %s475 = scalar_lea.vmem [#allocation1], 1
    %476 = vst [vmem:[%s475] ss:$9 sm:$0xff] %v381
    %s477 = scalar_lea.vmem [#allocation1], 2
    %478 = vst [vmem:[%s477] ss:$9 sm:$0xff] %v382
    %s479 = scalar_lea.vmem [#allocation1], 3
    %480 = vst [vmem:[%s479] ss:$9 sm:$0xff] %v383
    %s481 = scalar_lea.vmem [#allocation1], 4
    %482 = vst [vmem:[%s481] ss:$9 sm:$0xff] %v384
    %s483 = scalar_lea.vmem [#allocation1], 5
    %484 = vst [vmem:[%s483] ss:$9 sm:$0xff] %v385
    %v485 = vld [vmem:[#allocation1] sm:$0xff]
    %486 = vst [vmem:[#allocation1] ss:$9 sm:$0xff] %v386
    %487 = vst [vmem:[%s475] ss:$9 sm:$0xff] %v387
    %488 = vst [vmem:[%s477] ss:$9 sm:$0xff] %v388
    %489 = vst [vmem:[%s479] ss:$9 sm:$0xff] %v389
    %490 = vst [vmem:[%s481] ss:$9 sm:$0xff] %v390
    %491 = vst [vmem:[%s483] ss:$9 sm:$0xff] %v391
    %v492 = vld [vmem:[#allocation1] sm:$0xff]
    %493 = vrot.lane.b32.xlu0 %v485, 64
    %v494 = vpop.permute.xlu0 %493
    %495 = vrot.lane.b32.xlu0 %v492, 64
    %v496 = vpop.permute.xlu0 %495
    %v499 = vsel %vm101, %v415, %v457
    %v500 = vsel %vm101, %v422, %v459
    %vm501 = vcmask 523264
    %v502 = vsel %vm501, %v499, %v494
    %v503 = vsel %vm501, %v500, %v496
    %v504 = vld [vmem:[%s3] sm:$0xff]
    %v505 = vld [vmem:[%s3 + $0x8] sm:$0xff]
    %v506 = vld [vmem:[%s3 + $0x10] sm:$0xff]
    %v507 = vld [vmem:[%s3 + $0x18] sm:$0xff]
    %v508 = vld [vmem:[%s3 + $0x20] sm:$0xff]
    %v509 = vld [vmem:[%s3 + $0x28] sm:$0xff]
    %v510 = vld [vmem:[%s3 + $0x30] sm:$0xff]
    %v511 = vld [vmem:[%s3 + $0x38] sm:$0xff]
    %v512 = vld [vmem:[%s3 + $0x40] sm:$0xff]
    %v513 = vld [vmem:[%s3 + $0x48] sm:$0xff]
    %v514 = vld [vmem:[%s3 + $0x50] sm:$0xff]
    %v515 = vld [vmem:[%s3 + $0x58] sm:$0xff]
    %v518 = vrot.slane %v502, 4
    %v519 = vrot.slane %v503, 4
    %vm520 = vcmask 1042432
    %vm521 = vcmask 1046532
    %vm522 = vmor %vm520, %vm521
    %v523 = vrot.slane %v502, 5
    %v524 = vrot.slane %v523, 4
    %v525 = vrot.slane %v518, 5
    %v526 = vsel %vm522, %v524, %v525
    %v527 = vrot.slane %v503, 5
    %v528 = vrot.slane %v527, 4
    %v529 = vrot.slane %v519, 5
    %v530 = vsel %vm522, %v528, %v529
    %v531 = vld [vmem:[%s3 + $0x60] sm:$0xff]
    %v532 = vld [vmem:[%s3 + $0x68] sm:$0xff]
    %v533 = vld [vmem:[%s3 + $0x70] sm:$0xff]
    %v534 = vld [vmem:[%s3 + $0x78] sm:$0xff]
    %v535 = vld [vmem:[%s3 + $0x80] sm:$0xff]
    %v536 = vld [vmem:[%s3 + $0x88] sm:$0xff]
    %v537 = vld [vmem:[%s3 + $0x90] sm:$0xff]
    %v538 = vld [vmem:[%s3 + $0x98] sm:$0xff]
    %v539 = vld [vmem:[%s3 + $0xa0] sm:$0xff]
    %v540 = vld [vmem:[%s3 + $0xa8] sm:$0xff]
    %v541 = vld [vmem:[%s3 + $0xb0] sm:$0xff]
    %v542 = vld [vmem:[%s3 + $0xb8] sm:$0xff]
    %543 = vst [vmem:[#allocation1] ss:$2 sm:$0xff] %v526
    %s544 = scalar_lea.vmem [#allocation1], 1
    %545 = vst [vmem:[%s544] ss:$2 sm:$0xff] %v530
    %v546 = vld.sshfl [vmem:[#allocation1] sm:$0xff pattern:$0x75316420]
    %vm547 = vcmask 785408
    %v548 = vsel %vm547, %v546, 0
    %550 = vmatpush.msra.mxu0 0.0
    %551 = vmatpush.msra.mxu0 0.0
    %552 = vmatpush.msra.mxu0 0.0
    %553 = vmatpush.msra.mxu0 0.0
    %554 = vmatpush.msra.mxu0 %v542
    %555 = vmatpush.msra.mxu0 %v541
    %556 = vmatpush.msra.mxu0 %v540
    %557 = vmatpush.msra.mxu0 %v539
    %558 = vmatpush.msra.mxu0 %v538
    %559 = vmatpush.msra.mxu0 %v537
    %560 = vmatpush.msra.mxu0 %v536
    %561 = vmatpush.msra.mxu0 %v535
    %562 = vmatpush.msra.mxu0 %v534
    %563 = vmatpush.msra.mxu0 %v533
    %564 = vmatpush.msra.mxu0 %v532
    %565 = vmatpush.msra.mxu0 %v531
    %566 = vmatmul.f32.gmra.mxu0 %v548
    %v567 = vpop.f32.mrf.mxu0
    %v568 = vadd.f32 0.0, %v567
    %569 = vdwg.mxu0
    %570 = vst [vmem:[#allocation1] ss:$2 sm:$0xff] %v502
    %s571 = scalar_lea.vmem [#allocation1], 1
    %572 = vst [vmem:[%s571] ss:$2 sm:$0xff] %v503
    %v573 = vld.sshfl [vmem:[#allocation1] sm:$0xff pattern:$0x75316420]
    %v574 = vsel %vm547, %v573, 0
    %576 = vmatpush.msra.mxu0 0.0
    %577 = vmatpush.msra.mxu0 0.0
    %578 = vmatpush.msra.mxu0 0.0
    %579 = vmatpush.msra.mxu0 0.0
    %580 = vmatpush.msra.mxu0 %v515
    %581 = vmatpush.msra.mxu0 %v514
    %582 = vmatpush.msra.mxu0 %v513
    %583 = vmatpush.msra.mxu0 %v512
    %584 = vmatpush.msra.mxu0 %v511
    %585 = vmatpush.msra.mxu0 %v510
    %586 = vmatpush.msra.mxu0 %v509
    %587 = vmatpush.msra.mxu0 %v508
    %588 = vmatpush.msra.mxu0 %v507
    %589 = vmatpush.msra.mxu0 %v506
    %590 = vmatpush.msra.mxu0 %v505
    %591 = vmatpush.msra.mxu0 %v504
    %592 = vmatmul.f32.gmra.mxu0 %v574
    %v593 = vpop.f32.mrf.mxu0
    %v594 = vadd.f32 %v568, %v593
    %595 = vdwg.mxu0
    %vm596 = vcmask 1041408
    %vm597 = vcmask 1045508
    %vm598 = vmor %vm596, %vm597
    %v599 = vrot.slane %v502, 6
    %v600 = vrot.slane %v599, 4
    %v601 = vrot.slane %v518, 6
    %v602 = vsel %vm598, %v600, %v601
    %v603 = vrot.slane %v503, 6
    %v604 = vrot.slane %v603, 4
    %v605 = vrot.slane %v519, 6
    %v606 = vsel %vm598, %v604, %v605
    %v607 = vld [vmem:[%s3 + $0xc0] sm:$0xff]
    %v608 = vld [vmem:[%s3 + $0xc8] sm:$0xff]
    %v609 = vld [vmem:[%s3 + $0xd0] sm:$0xff]
    %v610 = vld [vmem:[%s3 + $0xd8] sm:$0xff]
    %v611 = vld [vmem:[%s3 + $0xe0] sm:$0xff]
    %v612 = vld [vmem:[%s3 + $0xe8] sm:$0xff]
    %v613 = vld [vmem:[%s3 + $0xf0] sm:$0xff]
    %v614 = vld [vmem:[%s3 + $0xf8] sm:$0xff]
    %v615 = vld [vmem:[%s3 + $0x100] sm:$0xff]
    %v616 = vld [vmem:[%s3 + $0x108] sm:$0xff]
    %v617 = vld [vmem:[%s3 + $0x110] sm:$0xff]
    %v618 = vld [vmem:[%s3 + $0x118] sm:$0xff]
    %619 = vst [vmem:[#allocation1] ss:$2 sm:$0xff] %v602
    %s620 = scalar_lea.vmem [#allocation1], 1
    %621 = vst [vmem:[%s620] ss:$2 sm:$0xff] %v606
    %v622 = vld.sshfl [vmem:[#allocation1] sm:$0xff pattern:$0x75316420]
    %v623 = vsel %vm547, %v622, 0
    %625 = vmatpush.msra.mxu0 0.0
    %626 = vmatpush.msra.mxu0 0.0
    %627 = vmatpush.msra.mxu0 0.0
    %628 = vmatpush.msra.mxu0 0.0
    %629 = vmatpush.msra.mxu0 %v618
    %630 = vmatpush.msra.mxu0 %v617
    %631 = vmatpush.msra.mxu0 %v616
    %632 = vmatpush.msra.mxu0 %v615
    %633 = vmatpush.msra.mxu0 %v614
    %634 = vmatpush.msra.mxu0 %v613
    %635 = vmatpush.msra.mxu0 %v612
    %636 = vmatpush.msra.mxu0 %v611
    %637 = vmatpush.msra.mxu0 %v610
    %638 = vmatpush.msra.mxu0 %v609
    %639 = vmatpush.msra.mxu0 %v608
    %640 = vmatpush.msra.mxu0 %v607
    %641 = vmatmul.f32.gmra.mxu0 %v623
    %v642 = vpop.f32.mrf.mxu0
    %v643 = vadd.f32 0.0, %v642
    %644 = vdwg.mxu0
    %v645 = vadd.f32 %v594, %v643
    %v646 = vperm.slane %v21, 4
    %v647 = vadd.f32 %v645, %v646
    %v648 = vsel %vm501, %v647, 0.0
    %v649 = vrot.slane %v648, 4
    %v650 = vadd.f32 %v648, %v649
    %v651 = vrot.slane %v650, 2
    %v652 = vadd.f32 %v650, %v651
    %v653 = vrot.slane %v652, 1
    %v654 = vadd.f32 %v652, %v653
    %v655 = vrcp.pop 8.0
    %v656 = vmul.f32 8.0, %v655
    %v657 = vsub.f32 1.0, %v656
    %v658 = vmul.f32 %v655, %v657
    %v659 = vadd.f32 %v655, %v658
    %vm660 = vweird.f32 %v655
    %v661 = vsel %vm660, %v655, %v659
    %v662 = vmul.f32 %v654, %v661
    %v663 = vsub.f32 %v647, %v662
    %v664 = vmul.f32 %v663, %v663
    %v665 = vsel %vm501, %v664, 0.0
    %v666 = vrot.slane %v665, 4
    %v667 = vadd.f32 %v665, %v666
    %v668 = vrot.slane %v667, 2
    %v669 = vadd.f32 %v667, %v668
    %v670 = vrot.slane %v669, 1
    %v671 = vadd.f32 %v669, %v670
    %v672 = vmul.f32 %v671, %v661
    %v673 = vadd.f32 %v672, 1e-05
    %v674 = vrsqrt.pop %v673
    %v675 = vmul.f32 %v674, %v673
    %v676 = vmul.f32 %v675, %v674
    %v677 = vmul.f32 0.5, %v676
    %v678 = vsub.f32 1.5, %v677
    %v679 = vmul.f32 %v674, %v678
    %vm680 = vweird.f32 %v673
    %vm681 = vweird.f32 %v674
    %vm682 = vmor %vm680, %vm681
    %v683 = vsel %vm682, %v674, %v679
    %v684 = vmul.f32 %v21, %v683
    %v685 = vperm.slane %v684, 5
    %v686 = vmul.f32 %v663, %v685
    %v687 = vperm.slane %v21, 6
    %v688 = vadd.f32 %v686, %v687
    %v689 = vtanh.pop %v688
    %v691 = vrot.slane %v689, 4
    %v693 = vrot.slane %v689, 5
    %v694 = vrot.slane %v693, 4
    %v695 = vrot.slane %v691, 5
    %v696 = vrot.slane %v695, 4
    %v699 = vmax.f32 %v689, %v694
    %v700 = vmax.f32 %v691, %v696
    %v701 = vrot.slane %v689, 6
    %v702 = vrot.slane %v701, 4
    %v703 = vrot.slane %v691, 6
    %v704 = vrot.slane %v703, 4
    %v707 = vmax.f32 %v699, %v702
    %v708 = vmax.f32 %v700, %v704
    %v709 = vrot.slane %v689, 7
    %v710 = vrot.slane %v709, 4
    %v711 = vrot.slane %v691, 7
    %v712 = vrot.slane %v711, 4
    %v715 = vmax.f32 %v707, %v710
    %v716 = vmax.f32 %v708, %v712
    %v717 = vld [vmem:[%s1] sm:$0x3]
    %vm718 = vcmask 64512
    %v720 = vsel %vm718, %v717, 0
    %722 = vmatpush.msra.mxu0 0.0
    %723 = vmatpush.msra.mxu0 0.0
    %724 = vmatpush.msra.mxu0 0.0
    %725 = vmatpush.msra.mxu0 0.0
    %726 = vmatpush.msra.mxu0 0.0
    %727 = vmatpush.msra.mxu0 0.0
    %728 = vmatpush.msra.mxu0 0.0
    %729 = vmatpush.msra.mxu0 0.0
    %730 = vmatpush.msra.mxu0 0.0
    %731 = vmatpush.msra.mxu0 0.0
    %732 = vmatpush.msra.mxu0 0.0
    %733 = vmatpush.msra.mxu0 0.0
    %734 = vmatpush.msra.mxu0 0.0
    %735 = vmatpush.msra.mxu0 0.0
    %736 = vmatpush.msra.mxu0 0.0
    %737 = vmatpush.msra.mxu0 %v46
    %738 = vmatmul.f32.gmra.mxu0 %v720
    %v739 = vpop.f32.mrf.mxu0
    %v740 = vadd.f32 0.0, %v739
    %741 = vdwg.mxu0
    %v744 = vperm.slane %v715, 0
    %v745 = vperm.slane %v716, 0
    %vm746 = vcmask 1041409
    %v747 = vsel %vm746, %v745, %v744
    %v748 = vsel %vm501, %v747, 0
    %750 = vmatpush.msra.mxu0 0.0
    %751 = vmatpush.msra.mxu0 0.0
    %752 = vmatpush.msra.mxu0 0.0
    %753 = vmatpush.msra.mxu0 0.0
    %754 = vmatpush.msra.mxu0 0.0
    %755 = vmatpush.msra.mxu0 0.0
    %756 = vmatpush.msra.mxu0 0.0
    %757 = vmatpush.msra.mxu0 0.0
    %758 = vmatpush.msra.mxu0 %v45
    %759 = vmatpush.msra.mxu0 %v44
    %760 = vmatpush.msra.mxu0 %v43
    %761 = vmatpush.msra.mxu0 %v42
    %762 = vmatpush.msra.mxu0 %v41
    %763 = vmatpush.msra.mxu0 %v40
    %764 = vmatpush.msra.mxu0 %v39
    %765 = vmatpush.msra.mxu0 %v38
    %766 = vmatmul.f32.gmra.mxu0 %v748
    %v767 = vpop.f32.mrf.mxu0
    %v768 = vadd.f32 %v740, %v767
    %769 = vdwg.mxu0
    %v770 = vperm.slane %v21, 3
    %v771 = vadd.f32 %v768, %v770
    %v772 = vmax.f32 %v771, 0.0
    %v773 = vperm.slane %v21, 7
    %v775 = vsel %vm101, %v772, 0
    %777 = vmatpush.msra.mxu0 0.0
    %778 = vmatpush.msra.mxu0 0.0
    %779 = vmatpush.msra.mxu0 0.0
    %780 = vmatpush.msra.mxu0 0.0
    %781 = vmatpush.msra.mxu0 0.0
    %782 = vmatpush.msra.mxu0 0.0
    %783 = vmatpush.msra.mxu0 0.0
    %784 = vmatpush.msra.mxu0 0.0
    %785 = vmatpush.msra.mxu0 0.0
    %786 = vmatpush.msra.mxu0 0.0
    %787 = vmatpush.msra.mxu0 0.0
    %788 = vmatpush.msra.mxu0 0.0
    %789 = vmatpush.msra.mxu0 %v50
    %790 = vmatpush.msra.mxu0 %v49
    %791 = vmatpush.msra.mxu0 %v48
    %792 = vmatpush.msra.mxu0 %v47
    %793 = vmatmul.f32.gmra.mxu0 %v775
    %v794 = vpop.f32.mrf.mxu0
    %v795 = vadd.f32 %v773, %v794
    %796 = vdwg.mxu0
    %vm797 = vcmask 17408
    %798 = vst.msk [vmem:[#allocation2] sm:$0x3] %vm797, %v795
    // Predicated region
    $region22: #{selfonn_classifier.1} parent=1 // pred_check
      _
    $region23: #{selfonn_classifier.1} parent=1 // pred_check_branch
      %800 = sbr.rel (0) target = $region25
    $region24: #{selfonn_classifier.1} parent=1 // pred_region
      %802 = vsyncadd [#allocation3], 0
      %s804 = sshll.u32 [#allocation2], 4
      %s805 = int_to_ptr.vmem [resolvable:$true] %s804
      %s806 = sshll.u32 %s5, 4
      %s807 = int_to_ptr.hbm [resolvable:$true] %s806
      %809 = dma.vmem_to_hbm [thread:$0]  %s805, 32, %s807, [#allocation3]
    $region25: #{selfonn_classifier.1} parent=1 // pred_fallthru
      _
    // Predicated region
    $region26: #{selfonn_classifier.1} parent=1 // pred_check
      _
    $region27: #{selfonn_classifier.1} parent=1 // pred_check_branch
      %811 = sbr.rel (0) target = $region29
    $region28: #{selfonn_classifier.1} parent=1 // pred_region
      %813 = dma.done [#allocation3], 32
    $region29: #{selfonn_classifier.1} parent=1 // pred_fallthru
      _
    %814 = vsyncpa [#allocation3], 1

</llo_original>
